<compile_context>
chip_gen: v5e
topology: v5e:2x2
jax: 0.10.0
libtpu: 0.0.40
codegen_flags: <defaults>
</compile_context>

<pallas_src>
import jax
import jax.numpy as jnp
from jax.experimental import pallas as pl
from jax.experimental.pallas import tpu as pltpu


def _round_up(x: int, m: int) -> int:
    return (x + m - 1) // m * m


def _conv_forward_kernel(x_ref, w1_ref, shift_ref, w2_ref, b2_ref, o_ref):
    # x_ref:     (C,  ts)  activation tile; spatial (H*W) on the 128-lane axis
    # w1_ref:    (2C, C)   conv1 weight with BN scale pre-folded (bf16), resident
    # shift_ref: (2C, 1)   folded BN shift = beta - mean * scale (f32)
    # w2_ref:    (C,  2C)  conv2 weight (bf16), resident
    # b2_ref:    (C,  1)   conv2 bias (f32)
    # o_ref:     (C,  ts)  output tile (lane-dense)
    h = jnp.dot(w1_ref[...], x_ref[...], preferred_element_type=jnp.float32)   # (2C, ts)
    h = h + shift_ref[...]                 # BatchNorm (eval); scale already folded into w1
    h = h * jax.nn.sigmoid(h)              # SiLU (VPU + EUP)
    # TODO(synk): Dropout is identity in eval mode; a training-mode path would need
    # pltpu.prng_seed / pltpu.prng_random_bits and is not emitted here.
    out = jnp.dot(w2_ref[...], h.astype(w2_ref.dtype),
                  preferred_element_type=jnp.float32) + b2_ref[...]            # (C, ts)
    o_ref[...] = out.astype(o_ref.dtype)


def _vmem_budget_bytes() -> int:
    """~75% of physical VMEM: ~96 MiB on v5e/v6e (128 MiB), ~48 MiB on v7x (64 MiB)."""
    phys = None
    try:
        phys = int(pltpu.get_tpu_info().vmem_capacity_bytes)
    except Exception:
        phys = None
    if not phys:
        try:
            kind = jax.devices()[0].device_kind.lower()
            phys = (64 << 20) if "7" in kind else (128 << 20)
        except Exception:
            phys = 64 << 20            # conservative (v7x-sized) default
    return (phys * 3) // 4             # leave headroom for Mosaic scratch/semaphores


def conv_forward(x_nchw, w1, bn_gamma, bn_beta, bn_mean, bn_var, w2, b2,
                 *, eps=1e-5, spatial_tile=None,
                 act_dtype=jnp.bfloat16, out_dtype=jnp.bfloat16):
    """x_nchw: (N, C, H, W). Returns (N, C, H, W) in `out_dtype` (bf16 by default)."""
    N, C, H, W = x_nchw.shape
    C2 = 2 * C
    S = H * W
    act_bytes = jnp.dtype(act_dtype).itemsize
    out_bytes = jnp.dtype(out_dtype).itemsize

    # Fold eval-mode BN into conv1:  scale*(W1 @ x) + shift == (scale*W1) @ x + shift.
    scale = bn_gamma.astype(jnp.float32) / jnp.sqrt(bn_var.astype(jnp.float32) + eps)
    shift_col = (bn_beta.astype(jnp.float32)
                 - bn_mean.astype(jnp.float32) * scale).reshape(C2, 1)
    w1_m = (scale[:, None] * w1.reshape(C2, C).astype(jnp.float32)).astype(act_dtype)
    w2_m = w2.reshape(C, C2).astype(act_dtype)
    b2_col = b2.reshape(C, 1).astype(jnp.float32)

    # NCHW-native: flatten spatial (free reshape, no transpose).
    x3 = x_nchw.reshape(N, C, S).astype(act_dtype)

    # ---- spatial tiling: pad S only to a multiple of 128, ts = divisor of S_pad -------
    S_pad = _round_up(S, 128)
    q = S_pad // 128

    budget = _vmem_budget_bytes()
    resident = 2 * (2 * C2 * C * act_bytes + (C2 + C) * 4)    # weights (worst case: 2 bufs)
    per_col = (2 * C * act_bytes          # x tile, double-buffered
               + 2 * C * out_bytes        # out tile, double-buffered
               + 4 * C2 * 4)              # f32 intermediates (generous)
    avail = max(budget - resident - (4 << 20), 128 * per_col)
    cap_d = max(1, int(avail // per_col) // 128)              # cap in units of 128 lanes
    if spatial_tile is not None:
        cap_d = max(1, min(cap_d, int(spatial_tile) // 128))

    divisors = [d for d in range(1, q + 1) if q % d == 0]
    d = max([dd for dd in divisors if dd <= cap_d], default=1)
    # Guarantee >=2 total parallel grid steps so both v7x TensorCores have work.
    if N * (q // d) < 2 and q >= 2:
        d = max([dd for dd in divisors if q // dd >= 2], default=d)
    ts = d * 128
    n_s = q // d

    if S_pad != S:
        x3 = jnp.pad(x3, ((0, 0), (0, 0), (0, S_pad - S)))

    est_bytes = (2 * C * ts * act_bytes + 2 * C * ts * out_bytes
                 + 6 * C2 * ts * 4 + resident)
    vmem_limit = int(min(budget, max(est_bytes + (2 << 20), 16 << 20)))

    M = N * S
    cost = pl.CostEstimate(
        flops=int(8 * M * C * C),                              # two 1x1-conv channel matmuls
        transcendentals=int(M * C2),                           # sigmoid inside SiLU
        bytes_accessed=int(M * C * act_bytes + M * C * out_bytes
                           + 2 * C2 * C * act_bytes + (C2 + C) * 4),
    )

    def _call(single_buffer_consts: bool):
        const_kw = {"pipeline_mode": pl.Buffered(1)} if single_buffer_consts else {}
        in_specs = [
            pl.BlockSpec((None, C, ts), lambda n, j: (n, 0, j)),           # x spatial tile
            pl.BlockSpec((C2, C), lambda n, j: (0, 0), **const_kw),        # w1 (BN-scaled)
            pl.BlockSpec((C2, 1), lambda n, j: (0, 0), **const_kw),        # BN shift
            pl.BlockSpec((C, C2), lambda n, j: (0, 0), **const_kw),        # w2
            pl.BlockSpec((C, 1), lambda n, j: (0, 0), **const_kw),         # b2
        ]
        return pl.pallas_call(
            _conv_forward_kernel,
            out_shape=jax.ShapeDtypeStruct((N, C, S_pad), out_dtype),
            grid_spec=pltpu.PrefetchScalarGridSpec(
                num_scalar_prefetch=0,
                grid=(N, n_s),
                in_specs=in_specs,
                out_specs=pl.BlockSpec((None, C, ts), lambda n, j: (n, 0, j)),
            ),
            compiler_params=pltpu.CompilerParams(
                dimension_semantics=("parallel", "parallel"),
                vmem_limit_bytes=vmem_limit),
            cost_estimate=cost,
        )(x3, w1_m, shift_col, w2_m, b2_col)

    try:
        out3 = _call(True)      # single-buffered constant operands (frees VMEM)
    except Exception:
        out3 = _call(False)     # fallback if pipeline_mode=Buffered(1) is unsupported

    if S_pad != S:
        out3 = out3[:, :, :S]
    return out3.reshape(N, C, H, W)            # already NCHW — no transposes


def _reference(x_nchw, w1, bn_gamma, bn_beta, bn_mean, bn_var, w2, b2, eps=1e-5):
    # Plain-JAX f32 reference of the same (eval-mode) forward.
    N, C, H, W = x_nchw.shape
    C2 = 2 * C
    x = x_nchw.reshape(N, C, H * W)
    h = jnp.einsum("oc,ncs->nos", w1.reshape(C2, C), x)
    h = ((h - bn_mean[None, :, None]) / jnp.sqrt(bn_var + eps)[None, :, None]
         * bn_gamma[None, :, None] + bn_beta[None, :, None])
    h = h * jax.nn.sigmoid(h)
    o = jnp.einsum("oc,ncs->nos", w2.reshape(C, C2), h) + b2[None, :, None]
    return o.reshape(N, C, H, W)


if __name__ == "__main__":
    d_model = 4
    N, H, W = 2, 16, 16
    C, C2 = d_model, 2 * d_model

    key = jax.random.PRNGKey(0)
    kx, k1, k2, kb, kg, kbeta, km, kv = jax.random.split(key, 8)

    x = jax.random.normal(kx, (N, C, H, W), dtype=jnp.float32)

    # Deterministic parameter init (shapes match nn.Conv2d / nn.BatchNorm2d).
    w1 = jax.random.normal(k1, (C2, C, 1, 1), dtype=jnp.float32) * 0.1   # conv1, no bias
    w2 = jax.random.normal(k2, (C, C2, 1, 1), dtype=jnp.float32) * 0.1   # conv2
    b2 = jax.random.normal(kb, (C,), dtype=jnp.float32) * 0.1            # conv2 bias
    bn_gamma = 1.0 + 0.1 * jax.random.normal(kg, (C2,), dtype=jnp.float32)
    bn_beta = 0.1 * jax.random.normal(kbeta, (C2,), dtype=jnp.float32)
    bn_mean = 0.1 * jax.random.normal(km, (C2,), dtype=jnp.float32)
    bn_var = jnp.abs(1.0 + 0.1 * jax.random.normal(kv, (C2,), dtype=jnp.float32))

    out = conv_forward(x, w1, bn_gamma, bn_beta, bn_mean, bn_var, w2, b2)
    out = jax.block_until_ready(out)

    ref = _reference(x, w1, bn_gamma, bn_beta, bn_mean, bn_var, w2, b2)
    assert out.shape == (N, C, H, W)
    # bf16 activation/weight/output stream with f32 accumulation -> loosened tolerance.
    assert jnp.allclose(out.astype(jnp.float32), ref, atol=2e-2, rtol=2e-2), \
        "mismatch vs reference"

    print("KERNEL_OK")
</pallas_src>

<mosaic_0001>
module attributes {stable_mosaic.version = 11 : i64} {
  func.func @_conv_forward_kernel(%arg0: i32, %arg1: i32, %arg2: memref<1x4x256xbf16, #tpu.memory_space<vmem>>, %arg3: memref<8x4xbf16, #tpu.memory_space<vmem>>, %arg4: memref<8x1xf32, #tpu.memory_space<vmem>>, %arg5: memref<4x8xbf16, #tpu.memory_space<vmem>>, %arg6: memref<4x1xf32, #tpu.memory_space<vmem>>, %arg7: memref<1x4x256xbf16, #tpu.memory_space<vmem>>) attributes {dimension_semantics = [#tpu.dimension_semantics<parallel>, #tpu.dimension_semantics<parallel>], iteration_bounds = array<i64: 2, 1>, scalar_prefetch = 0 : i64, scratch_operands = 0 : i64, tpu.core_type = #tpu.core_type<tc>, window_params = [{transform_indices = @transform_0, window_bounds = array<i64: 1, 4, 256>}, {pipeline_mode = #tpu.pipeline_mode<synchronous>, transform_indices = @transform_1, window_bounds = array<i64: 8, 4>}, {pipeline_mode = #tpu.pipeline_mode<synchronous>, transform_indices = @transform_2, window_bounds = array<i64: 8, 1>}, {pipeline_mode = #tpu.pipeline_mode<synchronous>, transform_indices = @transform_3, window_bounds = array<i64: 4, 8>}, {pipeline_mode = #tpu.pipeline_mode<synchronous>, transform_indices = @transform_4, window_bounds = array<i64: 4, 1>}, {transform_indices = @transform_5, window_bounds = array<i64: 1, 4, 256>}]} {
    %c0 = arith.constant 0 : index
    %c0_0 = arith.constant 0 : index
    %0 = vector.load %arg3[%c0, %c0_0] : memref<8x4xbf16, #tpu.memory_space<vmem>>, vector<8x4xbf16>
    %c0_1 = arith.constant 0 : index
    %c0_2 = arith.constant 0 : index
    %c0_3 = arith.constant 0 : index
    %1 = vector.load %arg2[%c0_1, %c0_2, %c0_3] : memref<1x4x256xbf16, #tpu.memory_space<vmem>>, vector<1x4x256xbf16>
    %2 = vector.shape_cast %1 : vector<1x4x256xbf16> to vector<4x256xbf16>
    %cst = arith.constant dense<0.000000e+00> : vector<8x256xf32>
    %3 = tpu.matmul %0, %2, %cst {dimension_numbers = #tpu.dot_dimension_numbers<[1], [0], [0], [1], [0, 0, 1, 1], [], []>} : vector<8x4xbf16>, vector<4x256xbf16>, vector<8x256xf32> -> vector<8x256xf32>
    %c0_4 = arith.constant 0 : index
    %c0_5 = arith.constant 0 : index
    %4 = vector.load %arg4[%c0_4, %c0_5] : memref<8x1xf32, #tpu.memory_space<vmem>>, vector<8x1xf32>
    %5 = vector.broadcast %4 : vector<8x1xf32> to vector<8x256xf32>
    %6 = arith.addf %3, %5 : vector<8x256xf32>
    %7 = arith.negf %6 : vector<8x256xf32>
    %8 = math.exp %7 : vector<8x256xf32>
    %cst_6 = arith.constant 1.000000e+00 : f32
    %9 = vector.broadcast %cst_6 : f32 to vector<8x256xf32>
    %10 = arith.addf %9, %8 : vector<8x256xf32>
    %11 = arith.divf %9, %10 : vector<8x256xf32>
    %12 = arith.mulf %6, %11 : vector<8x256xf32>
    %c0_7 = arith.constant 0 : index
    %c0_8 = arith.constant 0 : index
    %13 = vector.load %arg5[%c0_7, %c0_8] : memref<4x8xbf16, #tpu.memory_space<vmem>>, vector<4x8xbf16>
    %14 = arith.truncf %12 : vector<8x256xf32> to vector<8x256xbf16>
    %cst_9 = arith.constant dense<0.000000e+00> : vector<4x256xf32>
    %15 = tpu.matmul %13, %14, %cst_9 {dimension_numbers = #tpu.dot_dimension_numbers<[1], [0], [0], [1], [0, 0, 1, 1], [], []>} : vector<4x8xbf16>, vector<8x256xbf16>, vector<4x256xf32> -> vector<4x256xf32>
    %c0_10 = arith.constant 0 : index
    %c0_11 = arith.constant 0 : index
    %16 = vector.load %arg6[%c0_10, %c0_11] : memref<4x1xf32, #tpu.memory_space<vmem>>, vector<4x1xf32>
    %17 = vector.broadcast %16 : vector<4x1xf32> to vector<4x256xf32>
    %18 = arith.addf %15, %17 : vector<4x256xf32>
    %19 = arith.truncf %18 : vector<4x256xf32> to vector<4x256xbf16>
    %c0_12 = arith.constant 0 : index
    %c0_13 = arith.constant 0 : index
    %c0_14 = arith.constant 0 : index
    %20 = vector.load %arg7[%c0_12, %c0_13, %c0_14] : memref<1x4x256xbf16, #tpu.memory_space<vmem>>, vector<1x4x256xbf16>
    %21 = vector.shape_cast %20 : vector<1x4x256xbf16> to vector<4x256xbf16>
    %22 = vector.shape_cast %19 : vector<4x256xbf16> to vector<1x4x256xbf16>
    tpu.vector_store %arg7[%c0_12, %c0_13, %c0_14], %22 {strides = array<i32>} : memref<1x4x256xbf16, #tpu.memory_space<vmem>>, vector<1x4x256xbf16>,
    return
  }
  func.func @transform_0(%arg0: i32, %arg1: i32) -> (i32, i32, i32) {
    %c0_i32 = arith.constant 0 : i32
    %c0_i32_0 = arith.constant 0 : i32
    return %arg0, %c0_i32, %arg1 : i32, i32, i32
  }
  func.func @transform_1(%arg0: i32, %arg1: i32) -> (i32, i32) {
    %c0_i32 = arith.constant 0 : i32
    %c0_i32_0 = arith.constant 0 : i32
    %c0_i32_1 = arith.constant 0 : i32
    return %c0_i32, %c0_i32_0 : i32, i32
  }
  func.func @transform_2(%arg0: i32, %arg1: i32) -> (i32, i32) {
    %c0_i32 = arith.constant 0 : i32
    %c0_i32_0 = arith.constant 0 : i32
    %c0_i32_1 = arith.constant 0 : i32
    return %c0_i32, %c0_i32_0 : i32, i32
  }
  func.func @transform_3(%arg0: i32, %arg1: i32) -> (i32, i32) {
    %c0_i32 = arith.constant 0 : i32
    %c0_i32_0 = arith.constant 0 : i32
    %c0_i32_1 = arith.constant 0 : i32
    return %c0_i32, %c0_i32_0 : i32, i32
  }
  func.func @transform_4(%arg0: i32, %arg1: i32) -> (i32, i32) {
    %c0_i32 = arith.constant 0 : i32
    %c0_i32_0 = arith.constant 0 : i32
    %c0_i32_1 = arith.constant 0 : i32
    return %c0_i32, %c0_i32_0 : i32, i32
  }
  func.func @transform_5(%arg0: i32, %arg1: i32) -> (i32, i32, i32) {
    %c0_i32 = arith.constant 0 : i32
    %c0_i32_0 = arith.constant 0 : i32
    return %arg0, %c0_i32, %arg1 : i32, i32, i32
  }
}

module attributes {stable_mosaic.version = 11 : i64} {
  func.func @_conv_forward_kernel(%arg0: i32, %arg1: i32, %arg2: memref<1x4x256xbf16, #tpu.memory_space<vmem>>, %arg3: memref<8x4xbf16, #tpu.memory_space<vmem>>, %arg4: memref<8x1xf32, #tpu.memory_space<vmem>>, %arg5: memref<4x8xbf16, #tpu.memory_space<vmem>>, %arg6: memref<4x1xf32, #tpu.memory_space<vmem>>, %arg7: memref<1x4x256xbf16, #tpu.memory_space<vmem>>) attributes {dimension_semantics = [#tpu.dimension_semantics<parallel>, #tpu.dimension_semantics<parallel>], iteration_bounds = array<i64: 2, 1>, scalar_prefetch = 0 : i64, scratch_operands = 0 : i64, tpu.core_type = #tpu.core_type<tc>, window_params = [{transform_indices = @transform_0, window_bounds = array<i64: 1, 4, 256>}, {pipeline_mode = #tpu.pipeline_mode<synchronous>, transform_indices = @transform_1, window_bounds = array<i64: 8, 4>}, {pipeline_mode = #tpu.pipeline_mode<synchronous>, transform_indices = @transform_2, window_bounds = array<i64: 8, 1>}, {pipeline_mode = #tpu.pipeline_mode<synchronous>, transform_indices = @transform_3, window_bounds = array<i64: 4, 8>}, {pipeline_mode = #tpu.pipeline_mode<synchronous>, transform_indices = @transform_4, window_bounds = array<i64: 4, 1>}, {transform_indices = @transform_5, window_bounds = array<i64: 1, 4, 256>}]} {
    %c0 = arith.constant 0 : index
    %c0_0 = arith.constant 0 : index
    %0 = vector.load %arg3[%c0, %c0_0] : memref<8x4xbf16, #tpu.memory_space<vmem>>, vector<8x4xbf16>
    %c0_1 = arith.constant 0 : index
    %c0_2 = arith.constant 0 : index
    %c0_3 = arith.constant 0 : index
    %1 = vector.load %arg2[%c0_1, %c0_2, %c0_3] : memref<1x4x256xbf16, #tpu.memory_space<vmem>>, vector<1x4x256xbf16>
    %2 = vector.shape_cast %1 : vector<1x4x256xbf16> to vector<4x256xbf16>
    %cst = arith.constant dense<0.000000e+00> : vector<8x256xf32>
    %3 = tpu.matmul %0, %2, %cst {dimension_numbers = #tpu.dot_dimension_numbers<[1], [0], [0], [1], [0, 0, 1, 1], [], []>} : vector<8x4xbf16>, vector<4x256xbf16>, vector<8x256xf32> -> vector<8x256xf32>
    %c0_4 = arith.constant 0 : index
    %c0_5 = arith.constant 0 : index
    %4 = vector.load %arg4[%c0_4, %c0_5] : memref<8x1xf32, #tpu.memory_space<vmem>>, vector<8x1xf32>
    %5 = vector.broadcast %4 : vector<8x1xf32> to vector<8x256xf32>
    %6 = arith.addf %3, %5 : vector<8x256xf32>
    %7 = arith.negf %6 : vector<8x256xf32>
    %8 = math.exp %7 : vector<8x256xf32>
    %cst_6 = arith.constant 1.000000e+00 : f32
    %9 = vector.broadcast %cst_6 : f32 to vector<8x256xf32>
    %10 = arith.addf %9, %8 : vector<8x256xf32>
    %11 = arith.divf %9, %10 : vector<8x256xf32>
    %12 = arith.mulf %6, %11 : vector<8x256xf32>
    %c0_7 = arith.constant 0 : index
    %c0_8 = arith.constant 0 : index
    %13 = vector.load %arg5[%c0_7, %c0_8] : memref<4x8xbf16, #tpu.memory_space<vmem>>, vector<4x8xbf16>
    %14 = arith.truncf %12 : vector<8x256xf32> to vector<8x256xbf16>
    %cst_9 = arith.constant dense<0.000000e+00> : vector<4x256xf32>
    %15 = tpu.matmul %13, %14, %cst_9 {dimension_numbers = #tpu.dot_dimension_numbers<[1], [0], [0], [1], [0, 0, 1, 1], [], []>} : vector<4x8xbf16>, vector<8x256xbf16>, vector<4x256xf32> -> vector<4x256xf32>
    %c0_10 = arith.constant 0 : index
    %c0_11 = arith.constant 0 : index
    %16 = vector.load %arg6[%c0_10, %c0_11] : memref<4x1xf32, #tpu.memory_space<vmem>>, vector<4x1xf32>
    %17 = vector.broadcast %16 : vector<4x1xf32> to vector<4x256xf32>
    %18 = arith.addf %15, %17 : vector<4x256xf32>
    %19 = arith.truncf %18 : vector<4x256xf32> to vector<4x256xbf16>
    %c0_12 = arith.constant 0 : index
    %c0_13 = arith.constant 0 : index
    %c0_14 = arith.constant 0 : index
    %20 = vector.load %arg7[%c0_12, %c0_13, %c0_14] : memref<1x4x256xbf16, #tpu.memory_space<vmem>>, vector<1x4x256xbf16>
    %21 = vector.shape_cast %20 : vector<1x4x256xbf16> to vector<4x256xbf16>
    %22 = vector.shape_cast %19 : vector<4x256xbf16> to vector<1x4x256xbf16>
    tpu.vector_store %arg7[%c0_12, %c0_13, %c0_14], %22 {strides = array<i32>} : memref<1x4x256xbf16, #tpu.memory_space<vmem>>, vector<1x4x256xbf16>,
    return
  }
  func.func @transform_0(%arg0: i32, %arg1: i32) -> (i32, i32, i32) {
    %c0_i32 = arith.constant 0 : i32
    %c0_i32_0 = arith.constant 0 : i32
    return %arg0, %c0_i32, %arg1 : i32, i32, i32
  }
  func.func @transform_1(%arg0: i32, %arg1: i32) -> (i32, i32) {
    %c0_i32 = arith.constant 0 : i32
    %c0_i32_0 = arith.constant 0 : i32
    %c0_i32_1 = arith.constant 0 : i32
    return %c0_i32, %c0_i32_0 : i32, i32
  }
  func.func @transform_2(%arg0: i32, %arg1: i32) -> (i32, i32) {
    %c0_i32 = arith.constant 0 : i32
    %c0_i32_0 = arith.constant 0 : i32
    %c0_i32_1 = arith.constant 0 : i32
    return %c0_i32, %c0_i32_0 : i32, i32
  }
  func.func @transform_3(%arg0: i32, %arg1: i32) -> (i32, i32) {
    %c0_i32 = arith.constant 0 : i32
    %c0_i32_0 = arith.constant 0 : i32
    %c0_i32_1 = arith.constant 0 : i32
    return %c0_i32, %c0_i32_0 : i32, i32
  }
  func.func @transform_4(%arg0: i32, %arg1: i32) -> (i32, i32) {
    %c0_i32 = arith.constant 0 : i32
    %c0_i32_0 = arith.constant 0 : i32
    %c0_i32_1 = arith.constant 0 : i32
    return %c0_i32, %c0_i32_0 : i32, i32
  }
  func.func @transform_5(%arg0: i32, %arg1: i32) -> (i32, i32, i32) {
    %c0_i32 = arith.constant 0 : i32
    %c0_i32_0 = arith.constant 0 : i32
    return %arg0, %c0_i32, %arg1 : i32, i32, i32
  }
}

</mosaic_0001>

<llo_original>
// kernel: tpu_custom_call.1
$region0: #{tpu_custom_call.1}
  #allocation0 [shape = 'u32[]', space=smem, size = 0x4, offset = 0x4, fixed_abs, tag = 'smem constant byte address 0x4 - core index']
  #allocation1 [shape = 'u32[72,128]{1,0:T(1,128)}', space=vmem, size = 0x9000, scoped, tag = 'internal scratch']
  %s0 = inlined_call_operand.vmem [shape: bf16[2,4,256], index: 0, kind: input, shape index: {}]
  %s1 = inlined_call_operand.vmem [shape: bf16[8,4], index: 1, kind: input, shape index: {}]
  %s2 = inlined_call_operand.vmem [shape: f32[8,1], index: 2, kind: input, shape index: {}]
  %s3 = inlined_call_operand.vmem [shape: bf16[4,8], index: 3, kind: input, shape index: {}]
  %s4 = inlined_call_operand.vmem [shape: f32[4,1], index: 4, kind: input, shape index: {}]
  %s5 = inlined_call_operand.hbm [shape: bf16[2,4,256], index: 5, kind: output, shape index: {}]
  %s6 = sld [smem:[#allocation0]]
  $region53: #{tpu_custom_call.1} parent=0
    _
  %s8 = ssub.s32 1, %s6
  %s9 = scalar_select 0, %s8, %s6
  $region1: #{tpu_custom_call.1} parent=0
    #allocation2 [shape = 'u8[4096]{0}', space=vmem, size = 0x1000, scoped, tag = 'output window, operand 0']
    #allocation3 [shape = 's32[2]{0}', space=sflag, size = 0x8, scoped, tag = 'scoped memory for tpu_custom_call.1']
    %10 = vsyncpa [#allocation3], 0
    %s11 = scalar_lea.sflag [#allocation3], 1
    %12 = vsyncpa %s11, 0
    loop: start=0, step=1, limit=4
    $region2: #{tpu_custom_call.1} parent=1 // loop_pre_header
      _
    $region3: #{tpu_custom_call.1} parent=1 // loop_header
      %s14 = sphi 0, %s18
      %p15 = scmp.ge.s32.totalorder %s14, 4
      %s21 = sphi 0, %s33
      %s22 = sphi 0, %s29
      %s23 = sphi 0, %s21
      %s24 = sphi 0, %s22
      %s25 = sphi 0, %s23
      %s26 = sphi 0, %s24
      %s38 = sphi 0, %s40
      %s41 = sphi 0, %s38
      %s42 = sphi 0, %s41
      %s58 = sphi 0, %s42
      %s62 = sphi 0, %s62
      %s64 = sphi 0, %s62
      %s65 = sphi 0, %s64
      %s79 = sphi 0, %s65
      %s83 = sphi 0, %s83
      %s85 = sphi 0, %s83
      %s86 = sphi 0, %s85
      %s100 = sphi 0, %s86
      %s104 = sphi 0, %s104
      %s106 = sphi 0, %s104
      %s107 = sphi 0, %s106
      %s121 = sphi 0, %s107
      %s125 = sphi 0, %s125
      %s127 = sphi 0, %s125
      %s128 = sphi 0, %s127
      %s142 = sphi 0, %s128
      %s150 = sphi 0, %s152
      %s153 = sphi 0, %s150
      %s154 = sphi 0, %s153
      %s170 = sphi 0, %s154
    $region4: #{tpu_custom_call.1} parent=1 // loop_header_branch
      %17 = sbr.rel (%p15) target = $region8
    $region5: #{tpu_custom_call.1} parent=1 // loop_body
      %s19 = ssub.s32 %s14, 1
      %s20 = ssub.s32 %s14, 2
      %s27 = sadd.s32 1, %s22
      %p28 = scmp.ge.s32.totalorder %s27, 1
      %s29 = scalar_select %p28, 0, %s27
      %s30 = sadd.s32 1, %s21
      %s31 = scalar_select %p28, %s30, %s21
      %p32 = scmp.ge.s32.totalorder %s31, 2
      %s33 = scalar_select %p32, 0, %s31
      %s34 = ssub.s32 %s21, %s33
      %s35 = ssub.s32 %s22, %s29
      %s36 = sor.u32 %s34, %s35
      %p37 = scmp.eq.s32.totalorder %s36, 0
      %s39 = sadd.s32 %s38, 1
      %s40 = scalar_select %p37, %s38, %s39
      %p43 = pneg %p37
      %p44 = scmp.eq.s32.totalorder %s14, 1
      %p45 = por %p43, %p44
      %p46 = scmp.ne.s32.totalorder %s38, %s41
      %p47 = scmp.eq.s32.totalorder %s14, 0
      %p48 = por %p46, %p47
      %p49 = scmp.ne.s32.totalorder %s38, %s41
      %p50 = scmp.eq.s32.totalorder %s19, 1
      %p51 = por %p49, %p50
      %p52 = scmp.ne.s32.totalorder %s41, %s42
      %p53 = scmp.eq.s32.totalorder %s19, 0
      %p54 = por %p52, %p53
      %p55 = scmp.ne.s32.totalorder %s41, %s42
      %p56 = scmp.eq.s32.totalorder %s20, 1
      %p57 = por %p55, %p56
      %p59 = scmp.ne.s32.totalorder %s42, %s58
      %p60 = scmp.eq.s32.totalorder %s20, 0
      %p61 = por %p59, %p60
      %s63 = sadd.s32 %s62, 1
      %p66 = scmp.eq.s32.totalorder %s14, 1
      %p67 = scmp.ne.s32.totalorder %s62, %s64
      %p68 = scmp.eq.s32.totalorder %s14, 0
      %p69 = por %p67, %p68
      %p70 = scmp.ne.s32.totalorder %s62, %s64
      %p71 = scmp.eq.s32.totalorder %s19, 1
      %p72 = por %p70, %p71
      %p73 = scmp.ne.s32.totalorder %s64, %s65
      %p74 = scmp.eq.s32.totalorder %s19, 0
      %p75 = por %p73, %p74
      %p76 = scmp.ne.s32.totalorder %s64, %s65
      %p77 = scmp.eq.s32.totalorder %s20, 1
      %p78 = por %p76, %p77
      %p80 = scmp.ne.s32.totalorder %s65, %s79
      %p81 = scmp.eq.s32.totalorder %s20, 0
      %p82 = por %p80, %p81
      %s84 = sadd.s32 %s83, 1
      %p87 = scmp.eq.s32.totalorder %s14, 1
      %p88 = scmp.ne.s32.totalorder %s83, %s85
      %p89 = scmp.eq.s32.totalorder %s14, 0
      %p90 = por %p88, %p89
      %p91 = scmp.ne.s32.totalorder %s83, %s85
      %p92 = scmp.eq.s32.totalorder %s19, 1
      %p93 = por %p91, %p92
      %p94 = scmp.ne.s32.totalorder %s85, %s86
      %p95 = scmp.eq.s32.totalorder %s19, 0
      %p96 = por %p94, %p95
      %p97 = scmp.ne.s32.totalorder %s85, %s86
      %p98 = scmp.eq.s32.totalorder %s20, 1
      %p99 = por %p97, %p98
      %p101 = scmp.ne.s32.totalorder %s86, %s100
      %p102 = scmp.eq.s32.totalorder %s20, 0
      %p103 = por %p101, %p102
      %s105 = sadd.s32 %s104, 1
      %p108 = scmp.eq.s32.totalorder %s14, 1
      %p109 = scmp.ne.s32.totalorder %s104, %s106
      %p110 = scmp.eq.s32.totalorder %s14, 0
      %p111 = por %p109, %p110
      %p112 = scmp.ne.s32.totalorder %s104, %s106
      %p113 = scmp.eq.s32.totalorder %s19, 1
      %p114 = por %p112, %p113
      %p115 = scmp.ne.s32.totalorder %s106, %s107
      %p116 = scmp.eq.s32.totalorder %s19, 0
      %p117 = por %p115, %p116
      %p118 = scmp.ne.s32.totalorder %s106, %s107
      %p119 = scmp.eq.s32.totalorder %s20, 1
      %p120 = por %p118, %p119
      %p122 = scmp.ne.s32.totalorder %s107, %s121
      %p123 = scmp.eq.s32.totalorder %s20, 0
      %p124 = por %p122, %p123
      %s126 = sadd.s32 %s125, 1
      %p129 = scmp.eq.s32.totalorder %s14, 1
      %p130 = scmp.ne.s32.totalorder %s125, %s127
      %p131 = scmp.eq.s32.totalorder %s14, 0
      %p132 = por %p130, %p131
      %p133 = scmp.ne.s32.totalorder %s125, %s127
      %p134 = scmp.eq.s32.totalorder %s19, 1
      %p135 = por %p133, %p134
      %p136 = scmp.ne.s32.totalorder %s127, %s128
      %p137 = scmp.eq.s32.totalorder %s19, 0
      %p138 = por %p136, %p137
      %p139 = scmp.ne.s32.totalorder %s127, %s128
      %p140 = scmp.eq.s32.totalorder %s20, 1
      %p141 = por %p139, %p140
      %p143 = scmp.ne.s32.totalorder %s128, %s142
      %p144 = scmp.eq.s32.totalorder %s20, 0
      %p145 = por %p143, %p144
      %s146 = ssub.s32 %s21, %s33
      %s147 = ssub.s32 %s22, %s29
      %s148 = sor.u32 %s146, %s147
      %p149 = scmp.eq.s32.totalorder %s148, 0
      %s151 = sadd.s32 %s150, 1
      %s152 = scalar_select %p149, %s150, %s151
      %p155 = pneg %p149
      %p156 = scmp.eq.s32.totalorder %s14, 1
      %p157 = por %p155, %p156
      %p158 = scmp.ne.s32.totalorder %s150, %s153
      %p159 = scmp.eq.s32.totalorder %s14, 0
      %p160 = por %p158, %p159
      %p161 = scmp.ne.s32.totalorder %s150, %s153
      %p162 = scmp.eq.s32.totalorder %s19, 1
      %p163 = por %p161, %p162
      %p164 = scmp.ne.s32.totalorder %s153, %s154
      %p165 = scmp.eq.s32.totalorder %s19, 0
      %p166 = por %p164, %p165
      %p167 = scmp.ne.s32.totalorder %s153, %s154
      %p168 = scmp.eq.s32.totalorder %s20, 1
      %p169 = por %p167, %p168
      %p171 = scmp.ne.s32.totalorder %s154, %s170
      %p172 = scmp.eq.s32.totalorder %s20, 0
      %p173 = por %p171, %p172
      %p174 = scmp.le.s32.totalorder 1, %s14
      %p175 = scmp.lt.s32.totalorder %s14, 3
      %p176 = pnand %p174, %p175
      %p177 = pneg %p176
      // Predicated region
      $region9: #{tpu_custom_call.1} parent=5 // pred_check
        _
      $region10: #{tpu_custom_call.1} parent=5 // pred_check_branch
        %179 = sbr.rel (%p176) target = $region12
      $region11: #{tpu_custom_call.1} parent=5 // pred_region
        %s180 = ssub.s32 %s14, 1
        // Predicated region
        $region13: #{tpu_custom_call.1} parent=11 // pred_check
          %p181 = pneg %p75
        $region14: #{tpu_custom_call.1} parent=11 // pred_check_branch
          %183 = sbr.rel (%p181) target = $region16
        $region15: #{tpu_custom_call.1} parent=11 // pred_region
          _
        $region16: #{tpu_custom_call.1} parent=11 // pred_fallthru
          _
        // Predicated region
        $region17: #{tpu_custom_call.1} parent=11 // pred_check
          %p184 = pneg %p96
        $region18: #{tpu_custom_call.1} parent=11 // pred_check_branch
          %186 = sbr.rel (%p184) target = $region20
        $region19: #{tpu_custom_call.1} parent=11 // pred_region
          _
        $region20: #{tpu_custom_call.1} parent=11 // pred_fallthru
          _
        // Predicated region
        $region21: #{tpu_custom_call.1} parent=11 // pred_check
          %p187 = pneg %p117
        $region22: #{tpu_custom_call.1} parent=11 // pred_check_branch
          %189 = sbr.rel (%p187) target = $region24
        $region23: #{tpu_custom_call.1} parent=11 // pred_region
          _
        $region24: #{tpu_custom_call.1} parent=11 // pred_fallthru
          _
        // Predicated region
        $region25: #{tpu_custom_call.1} parent=11 // pred_check
          %p190 = pneg %p138
        $region26: #{tpu_custom_call.1} parent=11 // pred_check_branch
          %192 = sbr.rel (%p190) target = $region28
        $region27: #{tpu_custom_call.1} parent=11 // pred_region
          _
        $region28: #{tpu_custom_call.1} parent=11 // pred_fallthru
          _
      $region12: #{tpu_custom_call.1} parent=5 // pred_fallthru
        _
      %p193 = scmp.lt.s32.totalorder %s14, 2
      // Predicated region
      $region29: #{tpu_custom_call.1} parent=5 // pred_check
        %p194 = pneg %p193
      $region30: #{tpu_custom_call.1} parent=5 // pred_check_branch
        %196 = sbr.rel (%p194) target = $region32
      $region31: #{tpu_custom_call.1} parent=5 // pred_region
        // Predicated region
        $region33: #{tpu_custom_call.1} parent=31 // pred_check
          %p197 = pneg %p48
        $region34: #{tpu_custom_call.1} parent=31 // pred_check_branch
          %199 = sbr.rel (%p197) target = $region36
        $region35: #{tpu_custom_call.1} parent=31 // pred_region
          %s200 = smul.u32 2, %s22
          %p201 = scmp.lt.s32.totalorder %s21, 1
          %s202 = scalar_select %p201, %s21, 1
          %p203 = scmp.lt.s32.totalorder %s200, 1
          %s204 = scalar_select %p203, %s200, 1
          %s205 = smul.addr %s202, 2
          %s206 = sadd.s32 %s204, %s205
          %s207 = smul.addr %s206, 2
          %s208 = scalar_lea.vmem %s0, %s207
          %s209 = smul.u32 2, %s22
        $region36: #{tpu_custom_call.1} parent=31 // pred_fallthru
          _
      $region32: #{tpu_custom_call.1} parent=5 // pred_fallthru
        _
      %p210 = scmp.le.s32.totalorder 1, %s14
      %p211 = scmp.lt.s32.totalorder %s14, 3
      %p212 = pnand %p210, %p211
      %p213 = pneg %p212
      // Predicated region
      $region37: #{tpu_custom_call.1} parent=5 // pred_check
        _
      $region38: #{tpu_custom_call.1} parent=5 // pred_check_branch
        %215 = sbr.rel (%p212) target = $region40
      $region39: #{tpu_custom_call.1} parent=5 // pred_region
        %s216 = ssub.s32 %s14, 1
        %s217 = smul.u32 2, %s24
        %p218 = scmp.lt.s32.totalorder %s23, 1
        %s219 = scalar_select %p218, %s23, 1
        %p220 = scmp.lt.s32.totalorder %s217, 1
        %s221 = scalar_select %p220, %s217, 1
        %s222 = smul.addr %s219, 2
        %s223 = sadd.s32 %s221, %s222
        %s224 = smul.addr %s223, 2
        %s225 = scalar_lea.vmem %s0, %s224
        %p226 = pneg %p54
        %p227 = pneg %p51
        %p228 = pneg %p75
        %p229 = pneg %p72
        %p230 = pneg %p96
        %p231 = pneg %p93
        %p232 = pneg %p117
        %p233 = pneg %p114
        %p234 = pneg %p138
        %p235 = pneg %p135
        %p236 = pneg %p166
        %p237 = pneg %p163
        %s238 = sand.u32 %s153, 1
        %s239 = scalar_lea.sflag [#allocation3], %s238
        %s240 = sand.u32 %s153, 1
        %s241 = smul.addr %s240, 4
        %s242 = scalar_lea.vmem [#allocation2], %s241
        %s243 = smul.u32 2, %s24
        %p244 = scmp.lt.s32.totalorder %s23, 1
        %s245 = scalar_select %p244, %s23, 1
        %p246 = scmp.lt.s32.totalorder %s243, 1
        %s247 = scalar_select %p246, %s243, 1
        %s248 = smul.addr %s245, 2
        %s249 = sadd.s32 %s247, %s248
        %s250 = smul.addr %s249, 2
        %s251 = scalar_lea.vmem %s0, %s250
        %s252 = smul.u32 2, %s24
        %s253 = smul.u32 2, %s24
        %v255 = vld [vmem:[%s1] sm:$0xf]
        %v256 = vld [vmem:[%s251] sm:$0xf]
        %v257 = vld [vmem:[%s2] sm:$0xff]
        %259 = vset.pattern.permute.xlu0 0
        %260 = vperm.xlu0 %259, %v257
        %v261 = vpop.permute.xlu0 %260
        %264 = vst [vmem:[#allocation1] ss:$4 sm:$0xff] %v256
        %v265 = vld.sshfl [vmem:[#allocation1] sm:$0xff pattern:$0x73625140]
        %v266 = vld.sshfl [vmem:[#allocation1 + $0x8] sm:$0xff pattern:$0x73625140]
        %vm267 = vcmask 31744
        %v269 = vsel %vm267, %v255, 0
        %vm271 = vcmask 1041408
        %v272 = vsel %vm271, %v265, 0
        %v274 = vsel %vm271, %v266, 0
        %276 = vmatpush.bf16.msra.mxu0 0
        %277 = vmatpush.bf16.msra.mxu0 0
        %278 = vmatpush.bf16.msra.mxu0 0
        %279 = vmatpush.bf16.msra.mxu0 0
        %280 = vmatpush.bf16.msra.mxu0 0
        %281 = vmatpush.bf16.msra.mxu0 0
        %282 = vmatpush.bf16.msra.mxu0 0
        %283 = vmatpush.bf16.msra.mxu0 %v272
        %284 = vmatmul.bf16.gmra.mxu0 %v269
        %v285 = vpop.f32.mrf.mxu0
        %v286 = vadd.f32 %v261, %v285
        %v287 = vpop.f32.mrf.mxu0
        %288 = vdwg.mxu0
        %289 = vmatpush.bf16.msra.mxu0 0
        %290 = vmatpush.bf16.msra.mxu0 0
        %291 = vmatpush.bf16.msra.mxu0 0
        %292 = vmatpush.bf16.msra.mxu0 0
        %293 = vmatpush.bf16.msra.mxu0 0
        %294 = vmatpush.bf16.msra.mxu0 0
        %295 = vmatpush.bf16.msra.mxu0 0
        %296 = vmatpush.bf16.msra.mxu0 %v274
        %297 = vmatmul.bf16.gmra.mxu0 %v269
        %v298 = vpop.f32.mrf.mxu0
        %v299 = vadd.f32 %v261, %v298
        %v300 = vpop.f32.mrf.mxu0
        %301 = vdwg.mxu0
        %v302 = vxor.u32 %v286, 2147483648
        %v303 = vxor.u32 %v299, 2147483648
        %v304 = vmul.f32 %v302, 1.442695
        %v305 = vpow.pop %v304
        %v306 = vmul.f32 %v303, 1.442695
        %v307 = vpow.pop %v306
        %v308 = vadd.f32 %v305, 1.0
        %v309 = vadd.f32 %v307, 1.0
        %v310 = vrcp.pop %v308
        %v311 = vmul.f32 %v308, %v310
        %v312 = vsub.f32 1.0, %v311
        %v313 = vmul.f32 %v310, %v312
        %v314 = vadd.f32 %v310, %v313
        %vm315 = vweird.f32 %v308
        %vm316 = vweird.f32 %v310
        %vm317 = vmor %vm315, %vm316
        %v318 = vsel %vm317, %v310, %v314
        %v319 = vand.u32 2147483647, %v308
        %vm320 = vcmp.eq.f32.partialorder %v319, 8.507059e+37
        %v321 = vand.u32 %v308, 2147483648
        %v322 = vor.u32 1.1754944e-38, %v321
        %v323 = vsel %vm320, %v322, %v318
        %v324 = vmul.f32 1.0, %v323
        %v325 = vrcp.pop %v309
        %v326 = vmul.f32 %v309, %v325
        %v327 = vsub.f32 1.0, %v326
        %v328 = vmul.f32 %v325, %v327
        %v329 = vadd.f32 %v325, %v328
        %vm330 = vweird.f32 %v309
        %vm331 = vweird.f32 %v325
        %vm332 = vmor %vm330, %vm331
        %v333 = vsel %vm332, %v325, %v329
        %v334 = vand.u32 2147483647, %v309
        %vm335 = vcmp.eq.f32.partialorder %v334, 8.507059e+37
        %v336 = vand.u32 %v309, 2147483648
        %v337 = vor.u32 1.1754944e-38, %v336
        %v338 = vsel %vm335, %v337, %v333
        %v339 = vmul.f32 1.0, %v338
        %v340 = vmul.f32 %v286, %v324
        %v341 = vmul.f32 %v299, %v339
        %v342 = vld [vmem:[%s3] sm:$0x3]
        %v343 = vpack.c.bf16 %v340, %v340
        %v344 = vpack.c.bf16 %v341, %v341
        %v345 = vld [vmem:[%s4] sm:$0xf]
        %347 = vset.pattern.permute.xlu0 0
        %348 = vperm.xlu0 %347, %v345
        %v349 = vpop.permute.xlu0 %348
        %vm351 = vcmask 64512
        %v353 = vsel %vm351, %v342, 0
        %vm355 = vcmask 1043456
        %v357 = vsel %vm355, %v343, 0
        %v360 = vsel %vm355, %v344, 0
        %362 = vmatpush.bf16.msra.mxu0 0
        %363 = vmatpush.bf16.msra.mxu0 0
        %364 = vmatpush.bf16.msra.mxu0 0
        %365 = vmatpush.bf16.msra.mxu0 0
        %366 = vmatpush.bf16.msra.mxu0 0
        %367 = vmatpush.bf16.msra.mxu0 0
        %368 = vmatpush.bf16.msra.mxu0 0
        %369 = vmatpush.bf16.msra.mxu0 %v357
        %370 = vmatmul.bf16.gmra.mxu0 %v353
        %v371 = vpop.f32.mrf.mxu0
        %v372 = vadd.f32 %v349, %v371
        %v373 = vpop.f32.mrf.mxu0
        %374 = vdwg.mxu0
        %375 = vmatpush.bf16.msra.mxu0 0
        %376 = vmatpush.bf16.msra.mxu0 0
        %377 = vmatpush.bf16.msra.mxu0 0
        %378 = vmatpush.bf16.msra.mxu0 0
        %379 = vmatpush.bf16.msra.mxu0 0
        %380 = vmatpush.bf16.msra.mxu0 0
        %381 = vmatpush.bf16.msra.mxu0 0
        %382 = vmatpush.bf16.msra.mxu0 %v360
        %383 = vmatmul.bf16.gmra.mxu0 %v353
        %v384 = vpop.f32.mrf.mxu0
        %v385 = vadd.f32 %v349, %v384
        %v386 = vpop.f32.mrf.mxu0
        %387 = vdwg.mxu0
        %v388 = vpack.c.bf16 %v385, %v372
        %v390 = vrot.slane %v388, 2
        %v393 = vsel %vm271, %v388, %v390
        %395 = vst [vmem:[%s242] sm:$0xf] %v393
        %s396 = sand.u32 %s153, 1
        %s397 = scalar_lea.sflag [#allocation3], %s396
        %s398 = sand.u32 %s153, 1
        %s399 = smul.addr %s398, 4
        %s400 = scalar_lea.vmem [#allocation2], %s399
        // Predicated region
        $region41: #{tpu_custom_call.1} parent=39 // pred_check
          %p401 = pneg %p163
        $region42: #{tpu_custom_call.1} parent=39 // pred_check_branch
          %403 = sbr.rel (%p401) target = $region44
        $region43: #{tpu_custom_call.1} parent=39 // pred_region
          %s404 = smul.u32 2, %s24
          %406 = vsyncadd %s397, 0
          %s407 = smul.addr %s23, 2
          %s408 = sadd.s32 %s404, %s407
          %s409 = smul.addr %s408, 2
          %s410 = scalar_lea.hbm %s5, %s409
          %s412 = sshll.u32 %s400, 4
          %s413 = int_to_ptr.vmem [resolvable:$true] %s412
          %s414 = sshll.u32 %s410, 4
          %s415 = int_to_ptr.hbm [resolvable:$true] %s414
          %417 = dma.vmem_to_hbm [thread:$0]  %s413, 64, %s415, %s397
        $region44: #{tpu_custom_call.1} parent=39 // pred_fallthru
          _
      $region40: #{tpu_custom_call.1} parent=5 // pred_fallthru
        _
      %p418 = scmp.le.s32.totalorder 2, %s14
      // Predicated region
      $region45: #{tpu_custom_call.1} parent=5 // pred_check
        %p419 = pneg %p418
      $region46: #{tpu_custom_call.1} parent=5 // pred_check_branch
        %421 = sbr.rel (%p419) target = $region48
      $region47: #{tpu_custom_call.1} parent=5 // pred_region
        %s422 = ssub.s32 %s14, 2
        // Predicated region
        $region49: #{tpu_custom_call.1} parent=47 // pred_check
          %p423 = pneg %p169
        $region50: #{tpu_custom_call.1} parent=47 // pred_check_branch
          %425 = sbr.rel (%p423) target = $region52
        $region51: #{tpu_custom_call.1} parent=47 // pred_region
          %s426 = sand.u32 %s154, 1
          %s427 = scalar_lea.sflag [#allocation3], %s426
          %s428 = sand.u32 %s154, 1
          %s429 = smul.addr %s428, 4
          %s430 = scalar_lea.vmem [#allocation2], %s429
          %432 = dma.done %s427, 64
        $region52: #{tpu_custom_call.1} parent=47 // pred_fallthru
          _
      $region48: #{tpu_custom_call.1} parent=5 // pred_fallthru
        _
    $region6: #{tpu_custom_call.1} parent=1 // loop_footer
      %s18 = sadd.s32 1, %s14
    $region7: #{tpu_custom_call.1} parent=1 // loop_footer_branch
      %13 = sbr.rel target = $region3
    $region8: #{tpu_custom_call.1} parent=1 // loop_exit
      _
    %433 = vsyncpa [#allocation3], 1
    %s434 = scalar_lea.sflag [#allocation3], 1
    %435 = vsyncpa %s434, 1

// kernel: tpu_custom_call.1
$region0: #{tpu_custom_call.1}
  #allocation0 [shape = 'u32[]', space=smem, size = 0x4, offset = 0x4, fixed_abs, tag = 'smem constant byte address 0x4 - core index']
  #allocation1 [shape = 'u32[72,128]{1,0:T(1,128)}', space=vmem, size = 0x9000, scoped, tag = 'internal scratch']
  %s0 = inlined_call_operand.vmem [shape: bf16[2,4,256], index: 0, kind: input, shape index: {}]
  %s1 = inlined_call_operand.vmem [shape: bf16[8,4], index: 1, kind: input, shape index: {}]
  %s2 = inlined_call_operand.vmem [shape: f32[8,1], index: 2, kind: input, shape index: {}]
  %s3 = inlined_call_operand.vmem [shape: bf16[4,8], index: 3, kind: input, shape index: {}]
  %s4 = inlined_call_operand.vmem [shape: f32[4,1], index: 4, kind: input, shape index: {}]
  %s5 = inlined_call_operand.hbm [shape: bf16[2,4,256], index: 5, kind: output, shape index: {}]
  %s6 = sld [smem:[#allocation0]]
  $region53: #{tpu_custom_call.1} parent=0
    _
  %s8 = ssub.s32 1, %s6
  %s9 = scalar_select 0, %s8, %s6
  $region1: #{tpu_custom_call.1} parent=0
    #allocation2 [shape = 'u8[4096]{0}', space=vmem, size = 0x1000, scoped, tag = 'output window, operand 0']
    #allocation3 [shape = 's32[2]{0}', space=sflag, size = 0x8, scoped, tag = 'scoped memory for tpu_custom_call.1']
    %10 = vsyncpa [#allocation3], 0
    %s11 = scalar_lea.sflag [#allocation3], 1
    %12 = vsyncpa %s11, 0
    loop: start=0, step=1, limit=4
    $region2: #{tpu_custom_call.1} parent=1 // loop_pre_header
      _
    $region3: #{tpu_custom_call.1} parent=1 // loop_header
      %s14 = sphi 0, %s18
      %p15 = scmp.ge.s32.totalorder %s14, 4
      %s21 = sphi 0, %s33
      %s22 = sphi 0, %s29
      %s23 = sphi 0, %s21
      %s24 = sphi 0, %s22
      %s25 = sphi 0, %s23
      %s26 = sphi 0, %s24
      %s38 = sphi 0, %s40
      %s41 = sphi 0, %s38
      %s42 = sphi 0, %s41
      %s58 = sphi 0, %s42
      %s62 = sphi 0, %s62
      %s64 = sphi 0, %s62
      %s65 = sphi 0, %s64
      %s79 = sphi 0, %s65
      %s83 = sphi 0, %s83
      %s85 = sphi 0, %s83
      %s86 = sphi 0, %s85
      %s100 = sphi 0, %s86
      %s104 = sphi 0, %s104
      %s106 = sphi 0, %s104
      %s107 = sphi 0, %s106
      %s121 = sphi 0, %s107
      %s125 = sphi 0, %s125
      %s127 = sphi 0, %s125
      %s128 = sphi 0, %s127
      %s142 = sphi 0, %s128
      %s150 = sphi 0, %s152
      %s153 = sphi 0, %s150
      %s154 = sphi 0, %s153
      %s170 = sphi 0, %s154
    $region4: #{tpu_custom_call.1} parent=1 // loop_header_branch
      %17 = sbr.rel (%p15) target = $region8
    $region5: #{tpu_custom_call.1} parent=1 // loop_body
      %s19 = ssub.s32 %s14, 1
      %s20 = ssub.s32 %s14, 2
      %s27 = sadd.s32 1, %s22
      %p28 = scmp.ge.s32.totalorder %s27, 1
      %s29 = scalar_select %p28, 0, %s27
      %s30 = sadd.s32 1, %s21
      %s31 = scalar_select %p28, %s30, %s21
      %p32 = scmp.ge.s32.totalorder %s31, 2
      %s33 = scalar_select %p32, 0, %s31
      %s34 = ssub.s32 %s21, %s33
      %s35 = ssub.s32 %s22, %s29
      %s36 = sor.u32 %s34, %s35
      %p37 = scmp.eq.s32.totalorder %s36, 0
      %s39 = sadd.s32 %s38, 1
      %s40 = scalar_select %p37, %s38, %s39
      %p43 = pneg %p37
      %p44 = scmp.eq.s32.totalorder %s14, 1
      %p45 = por %p43, %p44
      %p46 = scmp.ne.s32.totalorder %s38, %s41
      %p47 = scmp.eq.s32.totalorder %s14, 0
      %p48 = por %p46, %p47
      %p49 = scmp.ne.s32.totalorder %s38, %s41
      %p50 = scmp.eq.s32.totalorder %s19, 1
      %p51 = por %p49, %p50
      %p52 = scmp.ne.s32.totalorder %s41, %s42
      %p53 = scmp.eq.s32.totalorder %s19, 0
      %p54 = por %p52, %p53
      %p55 = scmp.ne.s32.totalorder %s41, %s42
      %p56 = scmp.eq.s32.totalorder %s20, 1
      %p57 = por %p55, %p56
      %p59 = scmp.ne.s32.totalorder %s42, %s58
      %p60 = scmp.eq.s32.totalorder %s20, 0
      %p61 = por %p59, %p60
      %s63 = sadd.s32 %s62, 1
      %p66 = scmp.eq.s32.totalorder %s14, 1
      %p67 = scmp.ne.s32.totalorder %s62, %s64
      %p68 = scmp.eq.s32.totalorder %s14, 0
      %p69 = por %p67, %p68
      %p70 = scmp.ne.s32.totalorder %s62, %s64
      %p71 = scmp.eq.s32.totalorder %s19, 1
      %p72 = por %p70, %p71
      %p73 = scmp.ne.s32.totalorder %s64, %s65
      %p74 = scmp.eq.s32.totalorder %s19, 0
      %p75 = por %p73, %p74
      %p76 = scmp.ne.s32.totalorder %s64, %s65
      %p77 = scmp.eq.s32.totalorder %s20, 1
      %p78 = por %p76, %p77
      %p80 = scmp.ne.s32.totalorder %s65, %s79
      %p81 = scmp.eq.s32.totalorder %s20, 0
      %p82 = por %p80, %p81
      %s84 = sadd.s32 %s83, 1
      %p87 = scmp.eq.s32.totalorder %s14, 1
      %p88 = scmp.ne.s32.totalorder %s83, %s85
      %p89 = scmp.eq.s32.totalorder %s14, 0
      %p90 = por %p88, %p89
      %p91 = scmp.ne.s32.totalorder %s83, %s85
      %p92 = scmp.eq.s32.totalorder %s19, 1
      %p93 = por %p91, %p92
      %p94 = scmp.ne.s32.totalorder %s85, %s86
      %p95 = scmp.eq.s32.totalorder %s19, 0
      %p96 = por %p94, %p95
      %p97 = scmp.ne.s32.totalorder %s85, %s86
      %p98 = scmp.eq.s32.totalorder %s20, 1
      %p99 = por %p97, %p98
      %p101 = scmp.ne.s32.totalorder %s86, %s100
      %p102 = scmp.eq.s32.totalorder %s20, 0
      %p103 = por %p101, %p102
      %s105 = sadd.s32 %s104, 1
      %p108 = scmp.eq.s32.totalorder %s14, 1
      %p109 = scmp.ne.s32.totalorder %s104, %s106
      %p110 = scmp.eq.s32.totalorder %s14, 0
      %p111 = por %p109, %p110
      %p112 = scmp.ne.s32.totalorder %s104, %s106
      %p113 = scmp.eq.s32.totalorder %s19, 1
      %p114 = por %p112, %p113
      %p115 = scmp.ne.s32.totalorder %s106, %s107
      %p116 = scmp.eq.s32.totalorder %s19, 0
      %p117 = por %p115, %p116
      %p118 = scmp.ne.s32.totalorder %s106, %s107
      %p119 = scmp.eq.s32.totalorder %s20, 1
      %p120 = por %p118, %p119
      %p122 = scmp.ne.s32.totalorder %s107, %s121
      %p123 = scmp.eq.s32.totalorder %s20, 0
      %p124 = por %p122, %p123
      %s126 = sadd.s32 %s125, 1
      %p129 = scmp.eq.s32.totalorder %s14, 1
      %p130 = scmp.ne.s32.totalorder %s125, %s127
      %p131 = scmp.eq.s32.totalorder %s14, 0
      %p132 = por %p130, %p131
      %p133 = scmp.ne.s32.totalorder %s125, %s127
      %p134 = scmp.eq.s32.totalorder %s19, 1
      %p135 = por %p133, %p134
      %p136 = scmp.ne.s32.totalorder %s127, %s128
      %p137 = scmp.eq.s32.totalorder %s19, 0
      %p138 = por %p136, %p137
      %p139 = scmp.ne.s32.totalorder %s127, %s128
      %p140 = scmp.eq.s32.totalorder %s20, 1
      %p141 = por %p139, %p140
      %p143 = scmp.ne.s32.totalorder %s128, %s142
      %p144 = scmp.eq.s32.totalorder %s20, 0
      %p145 = por %p143, %p144
      %s146 = ssub.s32 %s21, %s33
      %s147 = ssub.s32 %s22, %s29
      %s148 = sor.u32 %s146, %s147
      %p149 = scmp.eq.s32.totalorder %s148, 0
      %s151 = sadd.s32 %s150, 1
      %s152 = scalar_select %p149, %s150, %s151
      %p155 = pneg %p149
      %p156 = scmp.eq.s32.totalorder %s14, 1
      %p157 = por %p155, %p156
      %p158 = scmp.ne.s32.totalorder %s150, %s153
      %p159 = scmp.eq.s32.totalorder %s14, 0
      %p160 = por %p158, %p159
      %p161 = scmp.ne.s32.totalorder %s150, %s153
      %p162 = scmp.eq.s32.totalorder %s19, 1
      %p163 = por %p161, %p162
      %p164 = scmp.ne.s32.totalorder %s153, %s154
      %p165 = scmp.eq.s32.totalorder %s19, 0
      %p166 = por %p164, %p165
      %p167 = scmp.ne.s32.totalorder %s153, %s154
      %p168 = scmp.eq.s32.totalorder %s20, 1
      %p169 = por %p167, %p168
      %p171 = scmp.ne.s32.totalorder %s154, %s170
      %p172 = scmp.eq.s32.totalorder %s20, 0
      %p173 = por %p171, %p172
      %p174 = scmp.le.s32.totalorder 1, %s14
      %p175 = scmp.lt.s32.totalorder %s14, 3
      %p176 = pnand %p174, %p175
      %p177 = pneg %p176
      // Predicated region
      $region9: #{tpu_custom_call.1} parent=5 // pred_check
        _
      $region10: #{tpu_custom_call.1} parent=5 // pred_check_branch
        %179 = sbr.rel (%p176) target = $region12
      $region11: #{tpu_custom_call.1} parent=5 // pred_region
        %s180 = ssub.s32 %s14, 1
        // Predicated region
        $region13: #{tpu_custom_call.1} parent=11 // pred_check
          %p181 = pneg %p75
        $region14: #{tpu_custom_call.1} parent=11 // pred_check_branch
          %183 = sbr.rel (%p181) target = $region16
        $region15: #{tpu_custom_call.1} parent=11 // pred_region
          _
        $region16: #{tpu_custom_call.1} parent=11 // pred_fallthru
          _
        // Predicated region
        $region17: #{tpu_custom_call.1} parent=11 // pred_check
          %p184 = pneg %p96
        $region18: #{tpu_custom_call.1} parent=11 // pred_check_branch
          %186 = sbr.rel (%p184) target = $region20
        $region19: #{tpu_custom_call.1} parent=11 // pred_region
          _
        $region20: #{tpu_custom_call.1} parent=11 // pred_fallthru
          _
        // Predicated region
        $region21: #{tpu_custom_call.1} parent=11 // pred_check
          %p187 = pneg %p117
        $region22: #{tpu_custom_call.1} parent=11 // pred_check_branch
          %189 = sbr.rel (%p187) target = $region24
        $region23: #{tpu_custom_call.1} parent=11 // pred_region
          _
        $region24: #{tpu_custom_call.1} parent=11 // pred_fallthru
          _
        // Predicated region
        $region25: #{tpu_custom_call.1} parent=11 // pred_check
          %p190 = pneg %p138
        $region26: #{tpu_custom_call.1} parent=11 // pred_check_branch
          %192 = sbr.rel (%p190) target = $region28
        $region27: #{tpu_custom_call.1} parent=11 // pred_region
          _
        $region28: #{tpu_custom_call.1} parent=11 // pred_fallthru
          _
      $region12: #{tpu_custom_call.1} parent=5 // pred_fallthru
        _
      %p193 = scmp.lt.s32.totalorder %s14, 2
      // Predicated region
      $region29: #{tpu_custom_call.1} parent=5 // pred_check
        %p194 = pneg %p193
      $region30: #{tpu_custom_call.1} parent=5 // pred_check_branch
        %196 = sbr.rel (%p194) target = $region32
      $region31: #{tpu_custom_call.1} parent=5 // pred_region
        // Predicated region
        $region33: #{tpu_custom_call.1} parent=31 // pred_check
          %p197 = pneg %p48
        $region34: #{tpu_custom_call.1} parent=31 // pred_check_branch
          %199 = sbr.rel (%p197) target = $region36
        $region35: #{tpu_custom_call.1} parent=31 // pred_region
          %s200 = smul.u32 2, %s22
          %p201 = scmp.lt.s32.totalorder %s21, 1
          %s202 = scalar_select %p201, %s21, 1
          %p203 = scmp.lt.s32.totalorder %s200, 1
          %s204 = scalar_select %p203, %s200, 1
          %s205 = smul.addr %s202, 2
          %s206 = sadd.s32 %s204, %s205
          %s207 = smul.addr %s206, 2
          %s208 = scalar_lea.vmem %s0, %s207
          %s209 = smul.u32 2, %s22
        $region36: #{tpu_custom_call.1} parent=31 // pred_fallthru
          _
      $region32: #{tpu_custom_call.1} parent=5 // pred_fallthru
        _
      %p210 = scmp.le.s32.totalorder 1, %s14
      %p211 = scmp.lt.s32.totalorder %s14, 3
      %p212 = pnand %p210, %p211
      %p213 = pneg %p212
      // Predicated region
      $region37: #{tpu_custom_call.1} parent=5 // pred_check
        _
      $region38: #{tpu_custom_call.1} parent=5 // pred_check_branch
        %215 = sbr.rel (%p212) target = $region40
      $region39: #{tpu_custom_call.1} parent=5 // pred_region
        %s216 = ssub.s32 %s14, 1
        %s217 = smul.u32 2, %s24
        %p218 = scmp.lt.s32.totalorder %s23, 1
        %s219 = scalar_select %p218, %s23, 1
        %p220 = scmp.lt.s32.totalorder %s217, 1
        %s221 = scalar_select %p220, %s217, 1
        %s222 = smul.addr %s219, 2
        %s223 = sadd.s32 %s221, %s222
        %s224 = smul.addr %s223, 2
        %s225 = scalar_lea.vmem %s0, %s224
        %p226 = pneg %p54
        %p227 = pneg %p51
        %p228 = pneg %p75
        %p229 = pneg %p72
        %p230 = pneg %p96
        %p231 = pneg %p93
        %p232 = pneg %p117
        %p233 = pneg %p114
        %p234 = pneg %p138
        %p235 = pneg %p135
        %p236 = pneg %p166
        %p237 = pneg %p163
        %s238 = sand.u32 %s153, 1
        %s239 = scalar_lea.sflag [#allocation3], %s238
        %s240 = sand.u32 %s153, 1
        %s241 = smul.addr %s240, 4
        %s242 = scalar_lea.vmem [#allocation2], %s241
        %s243 = smul.u32 2, %s24
        %p244 = scmp.lt.s32.totalorder %s23, 1
        %s245 = scalar_select %p244, %s23, 1
        %p246 = scmp.lt.s32.totalorder %s243, 1
        %s247 = scalar_select %p246, %s243, 1
        %s248 = smul.addr %s245, 2
        %s249 = sadd.s32 %s247, %s248
        %s250 = smul.addr %s249, 2
        %s251 = scalar_lea.vmem %s0, %s250
        %s252 = smul.u32 2, %s24
        %s253 = smul.u32 2, %s24
        %v255 = vld [vmem:[%s1] sm:$0xf]
        %v256 = vld [vmem:[%s251] sm:$0xf]
        %v257 = vld [vmem:[%s2] sm:$0xff]
        %259 = vset.pattern.permute.xlu0 0
        %260 = vperm.xlu0 %259, %v257
        %v261 = vpop.permute.xlu0 %260
        %264 = vst [vmem:[#allocation1] ss:$4 sm:$0xff] %v256
        %v265 = vld.sshfl [vmem:[#allocation1] sm:$0xff pattern:$0x73625140]
        %v266 = vld.sshfl [vmem:[#allocation1 + $0x8] sm:$0xff pattern:$0x73625140]
        %vm267 = vcmask 31744
        %v269 = vsel %vm267, %v255, 0
        %vm271 = vcmask 1041408
        %v272 = vsel %vm271, %v265, 0
        %v274 = vsel %vm271, %v266, 0
        %276 = vmatpush.bf16.msra.mxu0 0
        %277 = vmatpush.bf16.msra.mxu0 0
        %278 = vmatpush.bf16.msra.mxu0 0
        %279 = vmatpush.bf16.msra.mxu0 0
        %280 = vmatpush.bf16.msra.mxu0 0
        %281 = vmatpush.bf16.msra.mxu0 0
        %282 = vmatpush.bf16.msra.mxu0 0
        %283 = vmatpush.bf16.msra.mxu0 %v272
        %284 = vmatmul.bf16.gmra.mxu0 %v269
        %v285 = vpop.f32.mrf.mxu0
        %v286 = vadd.f32 %v261, %v285
        %v287 = vpop.f32.mrf.mxu0
        %288 = vdwg.mxu0
        %289 = vmatpush.bf16.msra.mxu0 0
        %290 = vmatpush.bf16.msra.mxu0 0
        %291 = vmatpush.bf16.msra.mxu0 0
        %292 = vmatpush.bf16.msra.mxu0 0
        %293 = vmatpush.bf16.msra.mxu0 0
        %294 = vmatpush.bf16.msra.mxu0 0
        %295 = vmatpush.bf16.msra.mxu0 0
        %296 = vmatpush.bf16.msra.mxu0 %v274
        %297 = vmatmul.bf16.gmra.mxu0 %v269
        %v298 = vpop.f32.mrf.mxu0
        %v299 = vadd.f32 %v261, %v298
        %v300 = vpop.f32.mrf.mxu0
        %301 = vdwg.mxu0
        %v302 = vxor.u32 %v286, 2147483648
        %v303 = vxor.u32 %v299, 2147483648
        %v304 = vmul.f32 %v302, 1.442695
        %v305 = vpow.pop %v304
        %v306 = vmul.f32 %v303, 1.442695
        %v307 = vpow.pop %v306
        %v308 = vadd.f32 %v305, 1.0
        %v309 = vadd.f32 %v307, 1.0
        %v310 = vrcp.pop %v308
        %v311 = vmul.f32 %v308, %v310
        %v312 = vsub.f32 1.0, %v311
        %v313 = vmul.f32 %v310, %v312
        %v314 = vadd.f32 %v310, %v313
        %vm315 = vweird.f32 %v308
        %vm316 = vweird.f32 %v310
        %vm317 = vmor %vm315, %vm316
        %v318 = vsel %vm317, %v310, %v314
        %v319 = vand.u32 2147483647, %v308
        %vm320 = vcmp.eq.f32.partialorder %v319, 8.507059e+37
        %v321 = vand.u32 %v308, 2147483648
        %v322 = vor.u32 1.1754944e-38, %v321
        %v323 = vsel %vm320, %v322, %v318
        %v324 = vmul.f32 1.0, %v323
        %v325 = vrcp.pop %v309
        %v326 = vmul.f32 %v309, %v325
        %v327 = vsub.f32 1.0, %v326
        %v328 = vmul.f32 %v325, %v327
        %v329 = vadd.f32 %v325, %v328
        %vm330 = vweird.f32 %v309
        %vm331 = vweird.f32 %v325
        %vm332 = vmor %vm330, %vm331
        %v333 = vsel %vm332, %v325, %v329
        %v334 = vand.u32 2147483647, %v309
        %vm335 = vcmp.eq.f32.partialorder %v334, 8.507059e+37
        %v336 = vand.u32 %v309, 2147483648
        %v337 = vor.u32 1.1754944e-38, %v336
        %v338 = vsel %vm335, %v337, %v333
        %v339 = vmul.f32 1.0, %v338
        %v340 = vmul.f32 %v286, %v324
        %v341 = vmul.f32 %v299, %v339
        %v342 = vld [vmem:[%s3] sm:$0x3]
        %v343 = vpack.c.bf16 %v340, %v340
        %v344 = vpack.c.bf16 %v341, %v341
        %v345 = vld [vmem:[%s4] sm:$0xf]
        %347 = vset.pattern.permute.xlu0 0
        %348 = vperm.xlu0 %347, %v345
        %v349 = vpop.permute.xlu0 %348
        %vm351 = vcmask 64512
        %v353 = vsel %vm351, %v342, 0
        %vm355 = vcmask 1043456
        %v357 = vsel %vm355, %v343, 0
        %v360 = vsel %vm355, %v344, 0
        %362 = vmatpush.bf16.msra.mxu0 0
        %363 = vmatpush.bf16.msra.mxu0 0
        %364 = vmatpush.bf16.msra.mxu0 0
        %365 = vmatpush.bf16.msra.mxu0 0
        %366 = vmatpush.bf16.msra.mxu0 0
        %367 = vmatpush.bf16.msra.mxu0 0
        %368 = vmatpush.bf16.msra.mxu0 0
        %369 = vmatpush.bf16.msra.mxu0 %v357
        %370 = vmatmul.bf16.gmra.mxu0 %v353
        %v371 = vpop.f32.mrf.mxu0
        %v372 = vadd.f32 %v349, %v371
        %v373 = vpop.f32.mrf.mxu0
        %374 = vdwg.mxu0
        %375 = vmatpush.bf16.msra.mxu0 0
        %376 = vmatpush.bf16.msra.mxu0 0
        %377 = vmatpush.bf16.msra.mxu0 0
        %378 = vmatpush.bf16.msra.mxu0 0
        %379 = vmatpush.bf16.msra.mxu0 0
        %380 = vmatpush.bf16.msra.mxu0 0
        %381 = vmatpush.bf16.msra.mxu0 0
        %382 = vmatpush.bf16.msra.mxu0 %v360
        %383 = vmatmul.bf16.gmra.mxu0 %v353
        %v384 = vpop.f32.mrf.mxu0
        %v385 = vadd.f32 %v349, %v384
        %v386 = vpop.f32.mrf.mxu0
        %387 = vdwg.mxu0
        %v388 = vpack.c.bf16 %v385, %v372
        %v390 = vrot.slane %v388, 2
        %v393 = vsel %vm271, %v388, %v390
        %395 = vst [vmem:[%s242] sm:$0xf] %v393
        %s396 = sand.u32 %s153, 1
        %s397 = scalar_lea.sflag [#allocation3], %s396
        %s398 = sand.u32 %s153, 1
        %s399 = smul.addr %s398, 4
        %s400 = scalar_lea.vmem [#allocation2], %s399
        // Predicated region
        $region41: #{tpu_custom_call.1} parent=39 // pred_check
          %p401 = pneg %p163
        $region42: #{tpu_custom_call.1} parent=39 // pred_check_branch
          %403 = sbr.rel (%p401) target = $region44
        $region43: #{tpu_custom_call.1} parent=39 // pred_region
          %s404 = smul.u32 2, %s24
          %406 = vsyncadd %s397, 0
          %s407 = smul.addr %s23, 2
          %s408 = sadd.s32 %s404, %s407
          %s409 = smul.addr %s408, 2
          %s410 = scalar_lea.hbm %s5, %s409
          %s412 = sshll.u32 %s400, 4
          %s413 = int_to_ptr.vmem [resolvable:$true] %s412
          %s414 = sshll.u32 %s410, 4
          %s415 = int_to_ptr.hbm [resolvable:$true] %s414
          %417 = dma.vmem_to_hbm [thread:$0]  %s413, 64, %s415, %s397
        $region44: #{tpu_custom_call.1} parent=39 // pred_fallthru
          _
      $region40: #{tpu_custom_call.1} parent=5 // pred_fallthru
        _
      %p418 = scmp.le.s32.totalorder 2, %s14
      // Predicated region
      $region45: #{tpu_custom_call.1} parent=5 // pred_check
        %p419 = pneg %p418
      $region46: #{tpu_custom_call.1} parent=5 // pred_check_branch
        %421 = sbr.rel (%p419) target = $region48
      $region47: #{tpu_custom_call.1} parent=5 // pred_region
        %s422 = ssub.s32 %s14, 2
        // Predicated region
        $region49: #{tpu_custom_call.1} parent=47 // pred_check
          %p423 = pneg %p169
        $region50: #{tpu_custom_call.1} parent=47 // pred_check_branch
          %425 = sbr.rel (%p423) target = $region52
        $region51: #{tpu_custom_call.1} parent=47 // pred_region
          %s426 = sand.u32 %s154, 1
          %s427 = scalar_lea.sflag [#allocation3], %s426
          %s428 = sand.u32 %s154, 1
          %s429 = smul.addr %s428, 4
          %s430 = scalar_lea.vmem [#allocation2], %s429
          %432 = dma.done %s427, 64
        $region52: #{tpu_custom_call.1} parent=47 // pred_fallthru
          _
      $region48: #{tpu_custom_call.1} parent=5 // pred_fallthru
        _
    $region6: #{tpu_custom_call.1} parent=1 // loop_footer
      %s18 = sadd.s32 1, %s14
    $region7: #{tpu_custom_call.1} parent=1 // loop_footer_branch
      %13 = sbr.rel target = $region3
    $region8: #{tpu_custom_call.1} parent=1 // loop_exit
      _
    %433 = vsyncpa [#allocation3], 1
    %s434 = scalar_lea.sflag [#allocation3], 1
    %435 = vsyncpa %s434, 1

</llo_original>
